<compile_context>
chip_gen: v5e
topology: v5e:2x2
jax: 0.10.0
libtpu: 0.0.40
codegen_flags: <defaults>
</compile_context>

<pallas_src>
import functools
import math

import jax
import jax.numpy as jnp
import numpy as np
from jax.experimental import pallas as pl
from jax.experimental.pallas import tpu as pltpu

EPS = 1e-5


def _round_up(x, m):
    return (x + m - 1) // m * m


# ----------------------------------------------------------------------------
# Kernel A: conv-as-matmul (im2col patches @ weight) + per-tile channel stats.
# grid = (M_tiles,), "parallel".
# ----------------------------------------------------------------------------
def conv_mm_kernel(p_ref, w_ref, y_ref, sum_ref, sq_ref):
    # bf16 x bf16 -> f32 accumulation on the MXU.
    y = jnp.dot(p_ref[...], w_ref[...], preferred_element_type=jnp.float32)
    y_ref[...] = y
    tm, cp = y.shape
    # Per-tile partial stats, reduced only along the leading (sublane-group)
    # axis; the final (8, Cp) -> (Cp,) reduce happens in the wrapper.
    yr = y.reshape(tm // 8, 8, cp)
    sum_ref[...] = jnp.sum(yr, axis=0)[None]
    sq_ref[...] = jnp.sum(yr * yr, axis=0)[None]


# ----------------------------------------------------------------------------
# Kernel B: y * scale + shift (folded BatchNorm) -> ReLU -> z, plus per-tile
# partial goodness. grid = (N, HoWo_tiles), both "parallel".
# ----------------------------------------------------------------------------
def make_bn_relu_goodness_kernel(hw_valid, tb, hw_padded):
    need_mask = hw_padded != hw_valid

    def kernel(y_ref, scale_ref, shift_ref, z_ref, g_ref):
        y = y_ref[0]                                             # (TB, Cp)
        z = jnp.maximum(y * scale_ref[...] + shift_ref[...], 0.0)
        if need_mask:
            t = pl.program_id(1)
            row = t * tb + jax.lax.broadcasted_iota(jnp.int32, (tb, 1), 0)
            z = jnp.where(row < hw_valid, z, 0.0)                # zero padded rows
        z_ref[0] = z
        zz = z * z
        g_ref[0, 0] = jnp.sum(zz.reshape(tb // 8, 8, zz.shape[-1]), axis=0)

    return kernel


# ----------------------------------------------------------------------------
# Glue: im2col (pad + strided slicing only) and the full ConvFF forward.
# ----------------------------------------------------------------------------
def _im2col(x_nhwc, stride):
    N, H, W, C = x_nhwc.shape
    xp = jnp.pad(x_nhwc, ((0, 0), (1, 1), (1, 1), (0, 0)))
    Ho = (H + 2 - 3) // stride + 1
    Wo = (W + 2 - 3) // stride + 1
    pieces = []
    for kh in range(3):
        for kw in range(3):
            pieces.append(
                xp[:,
                   kh:kh + stride * (Ho - 1) + 1:stride,
                   kw:kw + stride * (Wo - 1) + 1:stride,
                   :])
    p = jnp.stack(pieces, axis=3)                  # (N, Ho, Wo, 9, C)
    return p.reshape(N, Ho * Wo, 9 * C), Ho, Wo


@functools.partial(jax.jit, static_argnums=(4,))
def conv_ff_forward(x_nchw, w_oihw, gamma, beta, stride):
    N, Cin, H, W = x_nchw.shape
    Cout = w_oihw.shape[0]

    x_nhwc = jnp.transpose(x_nchw, (0, 2, 3, 1)).astype(jnp.float32)
    patches, Ho, Wo = _im2col(x_nhwc, stride)      # (N, Ho*Wo, 9*Cin)
    HoWo = Ho * Wo
    M = N * HoWo
    K = 9 * Cin

    # Lane-dense output channels.
    Cp = _round_up(Cout, 128)
    # weight (O, I, 3, 3) -> (kh, kw, cin) x out, zero-padded to Cp columns.
    Wmat = jnp.transpose(w_oihw, (2, 3, 1, 0)).reshape(K, Cout)
    Wmat = jnp.pad(Wmat, ((0, 0), (0, Cp - Cout))).astype(jnp.bfloat16)

    # M tiling (single grid axis, K kept whole).
    TM = min(512, _round_up(M, 128))
    Mp = _round_up(M, TM)
    Mt = Mp // TM
    P = patches.reshape(M, K).astype(jnp.bfloat16)
    Pp = jnp.pad(P, ((0, Mp - M), (0, 0)))         # zero rows are harmless

    y, psum, psq = pl.pallas_call(
        conv_mm_kernel,
        out_shape=(
            jax.ShapeDtypeStruct((Mp, Cp), jnp.float32),
            jax.ShapeDtypeStruct((Mt, 8, Cp), jnp.float32),
            jax.ShapeDtypeStruct((Mt, 8, Cp), jnp.float32),
        ),
        grid_spec=pltpu.PrefetchScalarGridSpec(
            num_scalar_prefetch=0,
            grid=(Mt,),
            in_specs=[
                pl.BlockSpec((TM, K), lambda m: (m, 0)),    # full-K block
                pl.BlockSpec((K, Cp), lambda m: (0, 0)),    # constant weight block
            ],
            out_specs=[
                pl.BlockSpec((TM, Cp), lambda m: (m, 0)),
                pl.BlockSpec((1, 8, Cp), lambda m: (m, 0, 0)),
                pl.BlockSpec((1, 8, Cp), lambda m: (m, 0, 0)),
            ],
        ),
        compiler_params=pltpu.CompilerParams(
            dimension_semantics=("parallel",)),
    )(Pp, Wmat)

    # BatchNorm2d training-mode statistics (biased variance over N*Ho*Wo).
    ch_sum = jnp.sum(psum, axis=(0, 1))            # (Cp,)
    ch_sq = jnp.sum(psq, axis=(0, 1))
    mean = ch_sum / float(M)
    var = ch_sq / float(M) - mean * mean
    var = jnp.maximum(var, 0.0)                    # guard f32 cancellation
    gamma_p = jnp.pad(gamma.astype(jnp.float32), (0, Cp - Cout))
    beta_p = jnp.pad(beta.astype(jnp.float32), (0, Cp - Cout))
    scale = gamma_p * jax.lax.rsqrt(var + EPS)     # folded BN: z = y*scale + shift
    shift = beta_p - mean * scale
    scale2 = scale.reshape(1, Cp)
    shift2 = shift.reshape(1, Cp)

    # Kernel B tiling over (N, HoWo-tiles).
    TB = min(512, _round_up(HoWo, 8))
    HWp = _round_up(HoWo, TB)
    T = HWp // TB
    y3 = y[:M].reshape(N, HoWo, Cp)
    if HWp != HoWo:
        y3 = jnp.pad(y3, ((0, 0), (0, HWp - HoWo), (0, 0)))

    z3, gpart = pl.pallas_call(
        make_bn_relu_goodness_kernel(HoWo, TB, HWp),
        out_shape=(
            jax.ShapeDtypeStruct((N, HWp, Cp), jnp.float32),
            jax.ShapeDtypeStruct((N, T, 8, Cp), jnp.float32),
        ),
        grid_spec=pltpu.PrefetchScalarGridSpec(
            num_scalar_prefetch=0,
            grid=(N, T),
            in_specs=[
                pl.BlockSpec((1, TB, Cp), lambda n, t: (n, t, 0)),
                pl.BlockSpec((1, Cp), lambda n, t: (0, 0)),
                pl.BlockSpec((1, Cp), lambda n, t: (0, 0)),
            ],
            out_specs=[
                pl.BlockSpec((1, TB, Cp), lambda n, t: (n, t, 0)),
                pl.BlockSpec((1, 1, 8, Cp), lambda n, t: (n, t, 0, 0)),
            ],
        ),
        input_output_aliases={0: 0},               # z reuses y's HBM buffer
        compiler_params=pltpu.CompilerParams(
            dimension_semantics=("parallel", "parallel")),
    )(y3, scale2, shift2)

    g = jnp.sum(gpart, axis=(1, 2, 3))                       # (N,)
    z = z3[:, :HoWo, :Cout].reshape(N, Ho, Wo, Cout)
    z = jnp.transpose(z, (0, 3, 1, 2))                        # back to NCHW
    return z, g


# ----------------------------------------------------------------------------
# Pure-JAX f32 reference for verification.
# ----------------------------------------------------------------------------
def reference_forward(x_nchw, w_oihw, gamma, beta, stride):
    y = jax.lax.conv_general_dilated(
        x_nchw.astype(jnp.float32), w_oihw.astype(jnp.float32),
        window_strides=(stride, stride), padding=((1, 1), (1, 1)),
        dimension_numbers=("NCHW", "OIHW", "NCHW"))
    mean = jnp.mean(y, axis=(0, 2, 3), keepdims=True)
    var = jnp.var(y, axis=(0, 2, 3), keepdims=True)   # biased, like PyTorch train BN
    z = (y - mean) * jax.lax.rsqrt(var + EPS)
    z = z * gamma.reshape(1, -1, 1, 1) + beta.reshape(1, -1, 1, 1)
    z = jnp.maximum(z, 0.0)
    g = jnp.sum(z.reshape(z.shape[0], -1) ** 2, axis=1)
    return z, g


if __name__ == "__main__":
    # Small shapes consistent with the module: batch=2, in_ch=4, out_ch=8,
    # spatial=16x16, stride=2  ->  output 8x8 per sample.
    N, Cin, Cout, H, W, stride = 2, 4, 8, 16, 16, 2

    key = jax.random.PRNGKey(0)
    kx, kw = jax.random.split(key)
    x = jax.random.normal(kx, (N, Cin, H, W), dtype=jnp.float32)
    fan_in = Cin * 3 * 3
    w = jax.random.normal(kw, (Cout, Cin, 3, 3), dtype=jnp.float32) / math.sqrt(fan_in)
    gamma = jnp.ones((Cout,), dtype=jnp.float32)   # nn.BatchNorm2d default init
    beta = jnp.zeros((Cout,), dtype=jnp.float32)

    z, g = conv_ff_forward(x, w, gamma, beta, stride)
    z = jax.block_until_ready(z)
    g = jax.block_until_ready(g)

    z_ref, g_ref = reference_forward(x, w, gamma, beta, stride)
    # bf16 MXU operands -> loosened tolerance vs the pure-f32 reference.
    np.testing.assert_allclose(np.asarray(z), np.asarray(z_ref), rtol=3e-2, atol=3e-2)
    np.testing.assert_allclose(np.asarray(g), np.asarray(g_ref), rtol=3e-2, atol=1e-1)

    print("KERNEL_OK")
</pallas_src>

<mosaic_0001>
module attributes {stable_mosaic.version = 11 : i64} {
  func.func @conv_mm_kernel(%arg0: i32, %arg1: memref<128x36xbf16, #tpu.memory_space<vmem>>, %arg2: memref<36x128xbf16, #tpu.memory_space<vmem>>, %arg3: memref<128x128xf32, #tpu.memory_space<vmem>>, %arg4: memref<1x8x128xf32, #tpu.memory_space<vmem>>, %arg5: memref<1x8x128xf32, #tpu.memory_space<vmem>>) attributes {dimension_semantics = [#tpu.dimension_semantics<parallel>], iteration_bounds = array<i64: 1>, scalar_prefetch = 0 : i64, scratch_operands = 0 : i64, tpu.core_type = #tpu.core_type<tc>, window_params = [{transform_indices = @transform_0, window_bounds = array<i64: 128, 36>}, {pipeline_mode = #tpu.pipeline_mode<synchronous>, transform_indices = @transform_1, window_bounds = array<i64: 36, 128>}, {transform_indices = @transform_2, window_bounds = array<i64: 128, 128>}, {transform_indices = @transform_3, window_bounds = array<i64: 1, 8, 128>}, {transform_indices = @transform_4, window_bounds = array<i64: 1, 8, 128>}]} {
    %c0 = arith.constant 0 : index
    %c0_0 = arith.constant 0 : index
    %0 = vector.load %arg1[%c0, %c0_0] : memref<128x36xbf16, #tpu.memory_space<vmem>>, vector<128x36xbf16>
    %c0_1 = arith.constant 0 : index
    %c0_2 = arith.constant 0 : index
    %1 = vector.load %arg2[%c0_1, %c0_2] : memref<36x128xbf16, #tpu.memory_space<vmem>>, vector<36x128xbf16>
    %cst = arith.constant dense<0.000000e+00> : vector<128x128xf32>
    %2 = tpu.matmul %0, %1, %cst {dimension_numbers = #tpu.dot_dimension_numbers<[1], [0], [0], [1], [0, 0, 1, 1], [], []>} : vector<128x36xbf16>, vector<36x128xbf16>, vector<128x128xf32> -> vector<128x128xf32>
    %c0_3 = arith.constant 0 : index
    %c0_4 = arith.constant 0 : index
    %3 = vector.load %arg3[%c0_3, %c0_4] : memref<128x128xf32, #tpu.memory_space<vmem>>, vector<128x128xf32>
    tpu.vector_store %arg3[%c0_3, %c0_4], %2 {strides = array<i32>} : memref<128x128xf32, #tpu.memory_space<vmem>>, vector<128x128xf32>,
    %4 = vector.shape_cast %2 : vector<128x128xf32> to vector<16x8x128xf32>
    %cst_5 = arith.constant dense<0.000000e+00> : vector<8x128xf32>
    %5 = vector.multi_reduction <add>, %4, %cst_5 [0] : vector<16x8x128xf32> to vector<8x128xf32>
    %6 = vector.shape_cast %5 : vector<8x128xf32> to vector<1x8x128xf32>
    %c0_6 = arith.constant 0 : index
    %c0_7 = arith.constant 0 : index
    %c0_8 = arith.constant 0 : index
    %7 = vector.load %arg4[%c0_6, %c0_7, %c0_8] : memref<1x8x128xf32, #tpu.memory_space<vmem>>, vector<1x8x128xf32>
    tpu.vector_store %arg4[%c0_6, %c0_7, %c0_8], %6 {strides = array<i32>} : memref<1x8x128xf32, #tpu.memory_space<vmem>>, vector<1x8x128xf32>,
    %8 = arith.mulf %4, %4 : vector<16x8x128xf32>
    %cst_9 = arith.constant dense<0.000000e+00> : vector<8x128xf32>
    %9 = vector.multi_reduction <add>, %8, %cst_9 [0] : vector<16x8x128xf32> to vector<8x128xf32>
    %10 = vector.shape_cast %9 : vector<8x128xf32> to vector<1x8x128xf32>
    %c0_10 = arith.constant 0 : index
    %c0_11 = arith.constant 0 : index
    %c0_12 = arith.constant 0 : index
    %11 = vector.load %arg5[%c0_10, %c0_11, %c0_12] : memref<1x8x128xf32, #tpu.memory_space<vmem>>, vector<1x8x128xf32>
    tpu.vector_store %arg5[%c0_10, %c0_11, %c0_12], %10 {strides = array<i32>} : memref<1x8x128xf32, #tpu.memory_space<vmem>>, vector<1x8x128xf32>,
    return
  }
  func.func @transform_0(%arg0: i32) -> (i32, i32) {
    %c0_i32 = arith.constant 0 : i32
    %c0_i32_0 = arith.constant 0 : i32
    return %arg0, %c0_i32 : i32, i32
  }
  func.func @transform_1(%arg0: i32) -> (i32, i32) {
    %c0_i32 = arith.constant 0 : i32
    %c0_i32_0 = arith.constant 0 : i32
    %c0_i32_1 = arith.constant 0 : i32
    return %c0_i32, %c0_i32_0 : i32, i32
  }
  func.func @transform_2(%arg0: i32) -> (i32, i32) {
    %c0_i32 = arith.constant 0 : i32
    %c0_i32_0 = arith.constant 0 : i32
    return %arg0, %c0_i32 : i32, i32
  }
  func.func @transform_3(%arg0: i32) -> (i32, i32, i32) {
    %c0_i32 = arith.constant 0 : i32
    %c0_i32_0 = arith.constant 0 : i32
    %c0_i32_1 = arith.constant 0 : i32
    return %arg0, %c0_i32, %c0_i32_0 : i32, i32, i32
  }
  func.func @transform_4(%arg0: i32) -> (i32, i32, i32) {
    %c0_i32 = arith.constant 0 : i32
    %c0_i32_0 = arith.constant 0 : i32
    %c0_i32_1 = arith.constant 0 : i32
    return %arg0, %c0_i32, %c0_i32_0 : i32, i32, i32
  }
}

module attributes {stable_mosaic.version = 11 : i64} {
  func.func @kernel(%arg0: i32, %arg1: i32, %arg2: memref<1x64x128xf32, #tpu.memory_space<vmem>>, %arg3: memref<1x128xf32, #tpu.memory_space<vmem>>, %arg4: memref<1x128xf32, #tpu.memory_space<vmem>>, %arg5: memref<1x64x128xf32, #tpu.memory_space<vmem>>, %arg6: memref<1x1x8x128xf32, #tpu.memory_space<vmem>>) attributes {dimension_semantics = [#tpu.dimension_semantics<parallel>, #tpu.dimension_semantics<parallel>], iteration_bounds = array<i64: 2, 1>, scalar_prefetch = 0 : i64, scratch_operands = 0 : i64, tpu.core_type = #tpu.core_type<tc>, window_params = [{transform_indices = @transform_0, window_bounds = array<i64: 1, 64, 128>}, {pipeline_mode = #tpu.pipeline_mode<synchronous>, transform_indices = @transform_1, window_bounds = array<i64: 1, 128>}, {pipeline_mode = #tpu.pipeline_mode<synchronous>, transform_indices = @transform_2, window_bounds = array<i64: 1, 128>}, {transform_indices = @transform_3, window_bounds = array<i64: 1, 64, 128>}, {transform_indices = @transform_4, window_bounds = array<i64: 1, 1, 8, 128>}]} {
    %c0 = arith.constant 0 : index
    %c0_0 = arith.constant 0 : index
    %c0_1 = arith.constant 0 : index
    %0 = vector.load %arg2[%c0, %c0_0, %c0_1] : memref<1x64x128xf32, #tpu.memory_space<vmem>>, vector<1x64x128xf32>
    %1 = vector.shape_cast %0 : vector<1x64x128xf32> to vector<64x128xf32>
    %c0_2 = arith.constant 0 : index
    %c0_3 = arith.constant 0 : index
    %2 = vector.load %arg3[%c0_2, %c0_3] : memref<1x128xf32, #tpu.memory_space<vmem>>, vector<1x128xf32>
    %3 = vector.broadcast %2 : vector<1x128xf32> to vector<64x128xf32>
    %4 = arith.mulf %1, %3 : vector<64x128xf32>
    %c0_4 = arith.constant 0 : index
    %c0_5 = arith.constant 0 : index
    %5 = vector.load %arg4[%c0_4, %c0_5] : memref<1x128xf32, #tpu.memory_space<vmem>>, vector<1x128xf32>
    %6 = vector.broadcast %5 : vector<1x128xf32> to vector<64x128xf32>
    %7 = arith.addf %4, %6 : vector<64x128xf32>
    %cst = arith.constant 0.000000e+00 : f32
    %8 = vector.broadcast %cst : f32 to vector<64x128xf32>
    %9 = arith.maximumf %7, %8 : vector<64x128xf32>
    %c0_6 = arith.constant 0 : index
    %c0_7 = arith.constant 0 : index
    %c0_8 = arith.constant 0 : index
    %10 = vector.load %arg5[%c0_6, %c0_7, %c0_8] : memref<1x64x128xf32, #tpu.memory_space<vmem>>, vector<1x64x128xf32>
    %11 = vector.shape_cast %10 : vector<1x64x128xf32> to vector<64x128xf32>
    %12 = vector.shape_cast %9 : vector<64x128xf32> to vector<1x64x128xf32>
    tpu.vector_store %arg5[%c0_6, %c0_7, %c0_8], %12 {strides = array<i32>} : memref<1x64x128xf32, #tpu.memory_space<vmem>>, vector<1x64x128xf32>,
    %13 = arith.mulf %9, %9 : vector<64x128xf32>
    %14 = vector.shape_cast %13 : vector<64x128xf32> to vector<8x8x128xf32>
    %cst_9 = arith.constant dense<0.000000e+00> : vector<8x128xf32>
    %15 = vector.multi_reduction <add>, %14, %cst_9 [0] : vector<8x8x128xf32> to vector<8x128xf32>
    %c0_10 = arith.constant 0 : index
    %c0_11 = arith.constant 0 : index
    %c0_12 = arith.constant 0 : index
    %c0_13 = arith.constant 0 : index
    %16 = vector.load %arg6[%c0_10, %c0_11, %c0_12, %c0_13] : memref<1x1x8x128xf32, #tpu.memory_space<vmem>>, vector<1x1x8x128xf32>
    %17 = vector.shape_cast %16 : vector<1x1x8x128xf32> to vector<8x128xf32>
    %18 = vector.shape_cast %15 : vector<8x128xf32> to vector<1x1x8x128xf32>
    tpu.vector_store %arg6[%c0_10, %c0_11, %c0_12, %c0_13], %18 {strides = array<i32>} : memref<1x1x8x128xf32, #tpu.memory_space<vmem>>, vector<1x1x8x128xf32>,
    return
  }
  func.func @transform_0(%arg0: i32, %arg1: i32) -> (i32, i32, i32) {
    %c0_i32 = arith.constant 0 : i32
    %c0_i32_0 = arith.constant 0 : i32
    return %arg0, %arg1, %c0_i32 : i32, i32, i32
  }
  func.func @transform_1(%arg0: i32, %arg1: i32) -> (i32, i32) {
    %c0_i32 = arith.constant 0 : i32
    %c0_i32_0 = arith.constant 0 : i32
    %c0_i32_1 = arith.constant 0 : i32
    return %c0_i32, %c0_i32_0 : i32, i32
  }
  func.func @transform_2(%arg0: i32, %arg1: i32) -> (i32, i32) {
    %c0_i32 = arith.constant 0 : i32
    %c0_i32_0 = arith.constant 0 : i32
    %c0_i32_1 = arith.constant 0 : i32
    return %c0_i32, %c0_i32_0 : i32, i32
  }
  func.func @transform_3(%arg0: i32, %arg1: i32) -> (i32, i32, i32) {
    %c0_i32 = arith.constant 0 : i32
    %c0_i32_0 = arith.constant 0 : i32
    return %arg0, %arg1, %c0_i32 : i32, i32, i32
  }
  func.func @transform_4(%arg0: i32, %arg1: i32) -> (i32, i32, i32, i32) {
    %c0_i32 = arith.constant 0 : i32
    %c0_i32_0 = arith.constant 0 : i32
    %c0_i32_1 = arith.constant 0 : i32
    return %arg0, %arg1, %c0_i32, %c0_i32_0 : i32, i32, i32, i32
  }
}

</mosaic_0001>

<llo_original>
// kernel: conv_ff_forward.3
$region0: #{conv_ff_forward.3}
  #allocation0 [shape = 'u32[]', space=smem, size = 0x4, offset = 0x4, fixed_abs, tag = 'smem constant byte address 0x4 - core index']
  #allocation1 [shape = 'u32[72,128]{1,0:T(1,128)}', space=vmem, size = 0x9000, scoped, tag = 'internal scratch']
  %s0 = inlined_call_operand.vmem [shape: f32[2,64,128], index: 0, kind: input, shape index: {}, may-alias: {0,3}]
  %s1 = inlined_call_operand.vmem [shape: f32[1,128], index: 1, kind: input, shape index: {}]
  %s2 = inlined_call_operand.vmem [shape: f32[1,128], index: 2, kind: input, shape index: {}]
  %s3 = inlined_call_operand.vmem [shape: f32[2,64,128], index: 3, kind: output, shape index: {0}, may-alias: {0,3}]
  %s4 = inlined_call_operand.vmem [shape: f32[2,1,8,128], index: 4, kind: output, shape index: {1}]
  %5 = xla_tuple %s3, %s4
  %s6 = sld [smem:[#allocation0]]
  $region53: #{conv_ff_forward.3} parent=0
    _
  %s8 = ssub.s32 1, %s6
  %s9 = scalar_select 0, %s8, %s6
  loop: start=0, step=1, limit=4
  $region2: #{conv_ff_forward.3} parent=0 // loop_pre_header
    _
  $region3: #{conv_ff_forward.3} parent=0 // loop_header
    %s11 = sphi 0, %s15
    %p12 = scmp.ge.s32.totalorder %s11, 4
    %s18 = sphi 0, %s30
    %s19 = sphi 0, %s26
    %s20 = sphi 0, %s18
    %s21 = sphi 0, %s19
    %s22 = sphi 0, %s20
    %s23 = sphi 0, %s21
    %s35 = sphi 0, %s37
    %s38 = sphi 0, %s35
    %s39 = sphi 0, %s38
    %s55 = sphi 0, %s39
    %s59 = sphi 0, %s59
    %s61 = sphi 0, %s59
    %s62 = sphi 0, %s61
    %s76 = sphi 0, %s62
    %s80 = sphi 0, %s80
    %s82 = sphi 0, %s80
    %s83 = sphi 0, %s82
    %s97 = sphi 0, %s83
    %s105 = sphi 0, %s107
    %s108 = sphi 0, %s105
    %s109 = sphi 0, %s108
    %s125 = sphi 0, %s109
    %s133 = sphi 0, %s135
    %s136 = sphi 0, %s133
    %s137 = sphi 0, %s136
    %s153 = sphi 0, %s137
  $region4: #{conv_ff_forward.3} parent=0 // loop_header_branch
    %14 = sbr.rel (%p12) target = $region8
  $region5: #{conv_ff_forward.3} parent=0 // loop_body
    %s16 = ssub.s32 %s11, 1
    %s17 = ssub.s32 %s11, 2
    %s24 = sadd.s32 1, %s19
    %p25 = scmp.ge.s32.totalorder %s24, 1
    %s26 = scalar_select %p25, 0, %s24
    %s27 = sadd.s32 1, %s18
    %s28 = scalar_select %p25, %s27, %s18
    %p29 = scmp.ge.s32.totalorder %s28, 2
    %s30 = scalar_select %p29, 0, %s28
    %s31 = ssub.s32 %s18, %s30
    %s32 = ssub.s32 %s19, %s26
    %s33 = sor.u32 %s31, %s32
    %p34 = scmp.eq.s32.totalorder %s33, 0
    %s36 = sadd.s32 %s35, 1
    %s37 = scalar_select %p34, %s35, %s36
    %p40 = pneg %p34
    %p41 = scmp.eq.s32.totalorder %s11, 1
    %p42 = por %p40, %p41
    %p43 = scmp.ne.s32.totalorder %s35, %s38
    %p44 = scmp.eq.s32.totalorder %s11, 0
    %p45 = por %p43, %p44
    %p46 = scmp.ne.s32.totalorder %s35, %s38
    %p47 = scmp.eq.s32.totalorder %s16, 1
    %p48 = por %p46, %p47
    %p49 = scmp.ne.s32.totalorder %s38, %s39
    %p50 = scmp.eq.s32.totalorder %s16, 0
    %p51 = por %p49, %p50
    %p52 = scmp.ne.s32.totalorder %s38, %s39
    %p53 = scmp.eq.s32.totalorder %s17, 1
    %p54 = por %p52, %p53
    %p56 = scmp.ne.s32.totalorder %s39, %s55
    %p57 = scmp.eq.s32.totalorder %s17, 0
    %p58 = por %p56, %p57
    %s60 = sadd.s32 %s59, 1
    %p63 = scmp.eq.s32.totalorder %s11, 1
    %p64 = scmp.ne.s32.totalorder %s59, %s61
    %p65 = scmp.eq.s32.totalorder %s11, 0
    %p66 = por %p64, %p65
    %p67 = scmp.ne.s32.totalorder %s59, %s61
    %p68 = scmp.eq.s32.totalorder %s16, 1
    %p69 = por %p67, %p68
    %p70 = scmp.ne.s32.totalorder %s61, %s62
    %p71 = scmp.eq.s32.totalorder %s16, 0
    %p72 = por %p70, %p71
    %p73 = scmp.ne.s32.totalorder %s61, %s62
    %p74 = scmp.eq.s32.totalorder %s17, 1
    %p75 = por %p73, %p74
    %p77 = scmp.ne.s32.totalorder %s62, %s76
    %p78 = scmp.eq.s32.totalorder %s17, 0
    %p79 = por %p77, %p78
    %s81 = sadd.s32 %s80, 1
    %p84 = scmp.eq.s32.totalorder %s11, 1
    %p85 = scmp.ne.s32.totalorder %s80, %s82
    %p86 = scmp.eq.s32.totalorder %s11, 0
    %p87 = por %p85, %p86
    %p88 = scmp.ne.s32.totalorder %s80, %s82
    %p89 = scmp.eq.s32.totalorder %s16, 1
    %p90 = por %p88, %p89
    %p91 = scmp.ne.s32.totalorder %s82, %s83
    %p92 = scmp.eq.s32.totalorder %s16, 0
    %p93 = por %p91, %p92
    %p94 = scmp.ne.s32.totalorder %s82, %s83
    %p95 = scmp.eq.s32.totalorder %s17, 1
    %p96 = por %p94, %p95
    %p98 = scmp.ne.s32.totalorder %s83, %s97
    %p99 = scmp.eq.s32.totalorder %s17, 0
    %p100 = por %p98, %p99
    %s101 = ssub.s32 %s18, %s30
    %s102 = ssub.s32 %s19, %s26
    %s103 = sor.u32 %s101, %s102
    %p104 = scmp.eq.s32.totalorder %s103, 0
    %s106 = sadd.s32 %s105, 1
    %s107 = scalar_select %p104, %s105, %s106
    %p110 = pneg %p104
    %p111 = scmp.eq.s32.totalorder %s11, 1
    %p112 = por %p110, %p111
    %p113 = scmp.ne.s32.totalorder %s105, %s108
    %p114 = scmp.eq.s32.totalorder %s11, 0
    %p115 = por %p113, %p114
    %p116 = scmp.ne.s32.totalorder %s105, %s108
    %p117 = scmp.eq.s32.totalorder %s16, 1
    %p118 = por %p116, %p117
    %p119 = scmp.ne.s32.totalorder %s108, %s109
    %p120 = scmp.eq.s32.totalorder %s16, 0
    %p121 = por %p119, %p120
    %p122 = scmp.ne.s32.totalorder %s108, %s109
    %p123 = scmp.eq.s32.totalorder %s17, 1
    %p124 = por %p122, %p123
    %p126 = scmp.ne.s32.totalorder %s109, %s125
    %p127 = scmp.eq.s32.totalorder %s17, 0
    %p128 = por %p126, %p127
    %s129 = ssub.s32 %s18, %s30
    %s130 = ssub.s32 %s19, %s26
    %s131 = sor.u32 %s129, %s130
    %p132 = scmp.eq.s32.totalorder %s131, 0
    %s134 = sadd.s32 %s133, 1
    %s135 = scalar_select %p132, %s133, %s134
    %p138 = pneg %p132
    %p139 = scmp.eq.s32.totalorder %s11, 1
    %p140 = por %p138, %p139
    %p141 = scmp.ne.s32.totalorder %s133, %s136
    %p142 = scmp.eq.s32.totalorder %s11, 0
    %p143 = por %p141, %p142
    %p144 = scmp.ne.s32.totalorder %s133, %s136
    %p145 = scmp.eq.s32.totalorder %s16, 1
    %p146 = por %p144, %p145
    %p147 = scmp.ne.s32.totalorder %s136, %s137
    %p148 = scmp.eq.s32.totalorder %s16, 0
    %p149 = por %p147, %p148
    %p150 = scmp.ne.s32.totalorder %s136, %s137
    %p151 = scmp.eq.s32.totalorder %s17, 1
    %p152 = por %p150, %p151
    %p154 = scmp.ne.s32.totalorder %s137, %s153
    %p155 = scmp.eq.s32.totalorder %s17, 0
    %p156 = por %p154, %p155
    %p157 = scmp.le.s32.totalorder 1, %s11
    %p158 = scmp.lt.s32.totalorder %s11, 3
    %p159 = pnand %p157, %p158
    %p160 = pneg %p159
    // Predicated region
    $region9: #{conv_ff_forward.3} parent=5 // pred_check
      _
    $region10: #{conv_ff_forward.3} parent=5 // pred_check_branch
      %162 = sbr.rel (%p159) target = $region12
    $region11: #{conv_ff_forward.3} parent=5 // pred_region
      %s163 = ssub.s32 %s11, 1
      // Predicated region
      $region13: #{conv_ff_forward.3} parent=11 // pred_check
        %p164 = pneg %p72
      $region14: #{conv_ff_forward.3} parent=11 // pred_check_branch
        %166 = sbr.rel (%p164) target = $region16
      $region15: #{conv_ff_forward.3} parent=11 // pred_region
        _
      $region16: #{conv_ff_forward.3} parent=11 // pred_fallthru
        _
      // Predicated region
      $region17: #{conv_ff_forward.3} parent=11 // pred_check
        %p167 = pneg %p93
      $region18: #{conv_ff_forward.3} parent=11 // pred_check_branch
        %169 = sbr.rel (%p167) target = $region20
      $region19: #{conv_ff_forward.3} parent=11 // pred_region
        _
      $region20: #{conv_ff_forward.3} parent=11 // pred_fallthru
        _
    $region12: #{conv_ff_forward.3} parent=5 // pred_fallthru
      _
    %p170 = scmp.lt.s32.totalorder %s11, 2
    // Predicated region
    $region21: #{conv_ff_forward.3} parent=5 // pred_check
      %p171 = pneg %p170
    $region22: #{conv_ff_forward.3} parent=5 // pred_check_branch
      %173 = sbr.rel (%p171) target = $region24
    $region23: #{conv_ff_forward.3} parent=5 // pred_region
      // Predicated region
      $region25: #{conv_ff_forward.3} parent=23 // pred_check
        %p174 = pneg %p45
      $region26: #{conv_ff_forward.3} parent=23 // pred_check_branch
        %176 = sbr.rel (%p174) target = $region28
      $region27: #{conv_ff_forward.3} parent=23 // pred_region
        %s177 = smul.u32 8, %s19
        %p178 = scmp.lt.s32.totalorder %s18, 1
        %s179 = scalar_select %p178, %s18, 1
        %p180 = scmp.lt.s32.totalorder %s177, 7
        %s181 = scalar_select %p180, %s177, 7
        %s182 = smul.addr %s179, 8
        %s183 = sadd.s32 %s181, %s182
        %s184 = smul.addr %s183, 8
        %s185 = scalar_lea.vmem %s0, %s184
        %s186 = smul.u32 8, %s19
      $region28: #{conv_ff_forward.3} parent=23 // pred_fallthru
        _
    $region24: #{conv_ff_forward.3} parent=5 // pred_fallthru
      _
    %p187 = scmp.le.s32.totalorder 1, %s11
    %p188 = scmp.lt.s32.totalorder %s11, 3
    %p189 = pnand %p187, %p188
    %p190 = pneg %p189
    // Predicated region
    $region29: #{conv_ff_forward.3} parent=5 // pred_check
      _
    $region30: #{conv_ff_forward.3} parent=5 // pred_check_branch
      %192 = sbr.rel (%p189) target = $region32
    $region31: #{conv_ff_forward.3} parent=5 // pred_region
      %s193 = ssub.s32 %s11, 1
      %s194 = smul.u32 8, %s21
      %p195 = scmp.lt.s32.totalorder %s20, 1
      %s196 = scalar_select %p195, %s20, 1
      %p197 = scmp.lt.s32.totalorder %s194, 7
      %s198 = scalar_select %p197, %s194, 7
      %s199 = smul.addr %s196, 8
      %s200 = sadd.s32 %s198, %s199
      %s201 = smul.addr %s200, 8
      %s202 = scalar_lea.vmem %s0, %s201
      %p203 = pneg %p51
      %p204 = pneg %p48
      %p205 = pneg %p72
      %p206 = pneg %p69
      %p207 = pneg %p93
      %p208 = pneg %p90
      %p209 = pneg %p121
      %p210 = pneg %p118
      %s211 = smul.u32 8, %s21
      %p212 = scmp.lt.s32.totalorder %s20, 1
      %s213 = scalar_select %p212, %s20, 1
      %p214 = scmp.lt.s32.totalorder %s211, 7
      %s215 = scalar_select %p214, %s211, 7
      %s216 = smul.addr %s213, 8
      %s217 = sadd.s32 %s215, %s216
      %s218 = smul.addr %s217, 8
      %s219 = scalar_lea.vmem %s3, %s218
      %p220 = pneg %p149
      %p221 = pneg %p146
      %p222 = scmp.lt.s32.totalorder %s20, 1
      %s223 = scalar_select %p222, %s20, 1
      %p224 = scmp.lt.s32.totalorder %s21, 0
      %s225 = scalar_select %p224, %s21, 0
      %s226 = sadd.s32 %s225, %s223
      %s227 = smul.addr %s226, 8
      %s228 = scalar_lea.vmem %s4, %s227
      %s229 = smul.u32 8, %s21
      %p230 = scmp.lt.s32.totalorder %s20, 1
      %s231 = scalar_select %p230, %s20, 1
      %p232 = scmp.lt.s32.totalorder %s229, 7
      %s233 = scalar_select %p232, %s229, 7
      %s234 = smul.addr %s231, 8
      %s235 = sadd.s32 %s233, %s234
      %s236 = smul.addr %s235, 8
      %s237 = scalar_lea.vmem %s0, %s236
      %s238 = smul.u32 8, %s21
      %s239 = smul.u32 8, %s21
      %p240 = scmp.lt.s32.totalorder %s20, 1
      %s241 = scalar_select %p240, %s20, 1
      %p242 = scmp.lt.s32.totalorder %s239, 7
      %s243 = scalar_select %p242, %s239, 7
      %s244 = smul.addr %s241, 8
      %s245 = sadd.s32 %s243, %s244
      %s246 = smul.addr %s245, 8
      %s247 = scalar_lea.vmem %s3, %s246
      %s248 = smul.u32 8, %s21
      %p249 = scmp.lt.s32.totalorder %s20, 1
      %s250 = scalar_select %p249, %s20, 1
      %p251 = scmp.lt.s32.totalorder %s21, 0
      %s252 = scalar_select %p251, %s21, 0
      %s253 = sadd.s32 %s252, %s250
      %s254 = smul.addr %s253, 8
      %s255 = scalar_lea.vmem %s4, %s254
      %v256 = vld [vmem:[%s237] sm:$0xff]
      %v257 = vld [vmem:[%s237 + $0x8] sm:$0xff]
      %v258 = vld [vmem:[%s237 + $0x10] sm:$0xff]
      %v259 = vld [vmem:[%s237 + $0x18] sm:$0xff]
      %v260 = vld [vmem:[%s237 + $0x20] sm:$0xff]
      %v261 = vld [vmem:[%s237 + $0x28] sm:$0xff]
      %v262 = vld [vmem:[%s237 + $0x30] sm:$0xff]
      %v263 = vld [vmem:[%s237 + $0x38] sm:$0xff]
      %v264 = vld [vmem:[%s1] sm:$0x1]
      %v266 = vperm.slane %v264, 0
      %v268 = vmul.f32 %v256, %v266
      %v269 = vmul.f32 %v257, %v266
      %v270 = vmul.f32 %v258, %v266
      %v271 = vmul.f32 %v259, %v266
      %v272 = vmul.f32 %v260, %v266
      %v273 = vmul.f32 %v261, %v266
      %v274 = vmul.f32 %v262, %v266
      %v275 = vmul.f32 %v263, %v266
      %v276 = vld [vmem:[%s2] sm:$0x1]
      %v278 = vperm.slane %v276, 0
      %v280 = vadd.f32 %v268, %v278
      %v281 = vadd.f32 %v269, %v278
      %v282 = vadd.f32 %v270, %v278
      %v283 = vadd.f32 %v271, %v278
      %v284 = vadd.f32 %v272, %v278
      %v285 = vadd.f32 %v273, %v278
      %v286 = vadd.f32 %v274, %v278
      %v287 = vadd.f32 %v275, %v278
      %v288 = vmax.f32 %v280, 0.0
      %v289 = vmax.f32 %v281, 0.0
      %v290 = vmax.f32 %v282, 0.0
      %v291 = vmax.f32 %v283, 0.0
      %v292 = vmax.f32 %v284, 0.0
      %v293 = vmax.f32 %v285, 0.0
      %v294 = vmax.f32 %v286, 0.0
      %v295 = vmax.f32 %v287, 0.0
      %296 = vst [vmem:[%s247] sm:$0xff] %v288
      %297 = vst [vmem:[%s247 + $0x8] sm:$0xff] %v289
      %298 = vst [vmem:[%s247 + $0x10] sm:$0xff] %v290
      %299 = vst [vmem:[%s247 + $0x18] sm:$0xff] %v291
      %300 = vst [vmem:[%s247 + $0x20] sm:$0xff] %v292
      %301 = vst [vmem:[%s247 + $0x28] sm:$0xff] %v293
      %302 = vst [vmem:[%s247 + $0x30] sm:$0xff] %v294
      %303 = vst [vmem:[%s247 + $0x38] sm:$0xff] %v295
      %v304 = vmul.f32 %v288, %v288
      %v305 = vmul.f32 %v289, %v289
      %v306 = vmul.f32 %v290, %v290
      %v307 = vmul.f32 %v291, %v291
      %v308 = vmul.f32 %v292, %v292
      %v309 = vmul.f32 %v293, %v293
      %v310 = vmul.f32 %v294, %v294
      %v311 = vmul.f32 %v295, %v295
      %v312 = vadd.f32 %v304, %v305
      %v313 = vadd.f32 %v312, %v306
      %v314 = vadd.f32 %v313, %v307
      %v315 = vadd.f32 %v314, %v308
      %v316 = vadd.f32 %v315, %v309
      %v317 = vadd.f32 %v316, %v310
      %v318 = vadd.f32 %v317, %v311
      %319 = vst [vmem:[%s255] sm:$0xff] %v318
      %s320 = smul.u32 8, %s21
      %p321 = scmp.lt.s32.totalorder %s20, 1
      %s322 = scalar_select %p321, %s20, 1
      %p323 = scmp.lt.s32.totalorder %s320, 7
      %s324 = scalar_select %p323, %s320, 7
      %s325 = smul.addr %s322, 8
      %s326 = sadd.s32 %s324, %s325
      %s327 = smul.addr %s326, 8
      %s328 = scalar_lea.vmem %s3, %s327
      %p329 = scmp.lt.s32.totalorder %s20, 1
      %s330 = scalar_select %p329, %s20, 1
      %p331 = scmp.lt.s32.totalorder %s21, 0
      %s332 = scalar_select %p331, %s21, 0
      %s333 = sadd.s32 %s332, %s330
      %s334 = smul.addr %s333, 8
      %s335 = scalar_lea.vmem %s4, %s334
      // Predicated region
      $region33: #{conv_ff_forward.3} parent=31 // pred_check
        %p336 = pneg %p118
      $region34: #{conv_ff_forward.3} parent=31 // pred_check_branch
        %338 = sbr.rel (%p336) target = $region36
      $region35: #{conv_ff_forward.3} parent=31 // pred_region
        %s339 = smul.u32 8, %s21
      $region36: #{conv_ff_forward.3} parent=31 // pred_fallthru
        _
      // Predicated region
      $region37: #{conv_ff_forward.3} parent=31 // pred_check
        %p340 = pneg %p146
      $region38: #{conv_ff_forward.3} parent=31 // pred_check_branch
        %342 = sbr.rel (%p340) target = $region40
      $region39: #{conv_ff_forward.3} parent=31 // pred_region
        _
      $region40: #{conv_ff_forward.3} parent=31 // pred_fallthru
        _
    $region32: #{conv_ff_forward.3} parent=5 // pred_fallthru
      _
    %p343 = scmp.le.s32.totalorder 2, %s11
    // Predicated region
    $region41: #{conv_ff_forward.3} parent=5 // pred_check
      %p344 = pneg %p343
    $region42: #{conv_ff_forward.3} parent=5 // pred_check_branch
      %346 = sbr.rel (%p344) target = $region44
    $region43: #{conv_ff_forward.3} parent=5 // pred_region
      %s347 = ssub.s32 %s11, 2
      // Predicated region
      $region45: #{conv_ff_forward.3} parent=43 // pred_check
        %p348 = pneg %p124
      $region46: #{conv_ff_forward.3} parent=43 // pred_check_branch
        %350 = sbr.rel (%p348) target = $region48
      $region47: #{conv_ff_forward.3} parent=43 // pred_region
        %s351 = smul.u32 8, %s23
        %p352 = scmp.lt.s32.totalorder %s22, 1
        %s353 = scalar_select %p352, %s22, 1
        %p354 = scmp.lt.s32.totalorder %s351, 7
        %s355 = scalar_select %p354, %s351, 7
        %s356 = smul.addr %s353, 8
        %s357 = sadd.s32 %s355, %s356
        %s358 = smul.addr %s357, 8
        %s359 = scalar_lea.vmem %s3, %s358
      $region48: #{conv_ff_forward.3} parent=43 // pred_fallthru
        _
      // Predicated region
      $region49: #{conv_ff_forward.3} parent=43 // pred_check
        %p360 = pneg %p152
      $region50: #{conv_ff_forward.3} parent=43 // pred_check_branch
        %362 = sbr.rel (%p360) target = $region52
      $region51: #{conv_ff_forward.3} parent=43 // pred_region
        %p363 = scmp.lt.s32.totalorder %s22, 1
        %s364 = scalar_select %p363, %s22, 1
        %p365 = scmp.lt.s32.totalorder %s23, 0
        %s366 = scalar_select %p365, %s23, 0
        %s367 = sadd.s32 %s366, %s364
        %s368 = smul.addr %s367, 8
        %s369 = scalar_lea.vmem %s4, %s368
      $region52: #{conv_ff_forward.3} parent=43 // pred_fallthru
        _
    $region44: #{conv_ff_forward.3} parent=5 // pred_fallthru
      _
  $region6: #{conv_ff_forward.3} parent=0 // loop_footer
    %s15 = sadd.s32 1, %s11
  $region7: #{conv_ff_forward.3} parent=0 // loop_footer_branch
    %10 = sbr.rel target = $region3
  $region8: #{conv_ff_forward.3} parent=0 // loop_exit
    _

// kernel: conv_ff_forward.2
$region0: #{conv_ff_forward.2}
  #allocation0 [shape = 'u32[]', space=smem, size = 0x4, offset = 0x4, fixed_abs, tag = 'smem constant byte address 0x4 - core index']
  #allocation1 [shape = 'u32[72,128]{1,0:T(1,128)}', space=vmem, size = 0x9000, scoped, tag = 'internal scratch']
  %s0 = inlined_call_operand.vmem [shape: bf16[128,36], index: 0, kind: input, shape index: {}]
  %s1 = inlined_call_operand.vmem [shape: bf16[36,128], index: 1, kind: input, shape index: {}]
  %s2 = inlined_call_operand.vmem [shape: f32[128,128], index: 2, kind: output, shape index: {0}]
  %s3 = inlined_call_operand.vmem [shape: f32[1,8,128], index: 3, kind: output, shape index: {1}]
  %s4 = inlined_call_operand.vmem [shape: f32[1,8,128], index: 4, kind: output, shape index: {2}]
  %5 = xla_tuple %s2, %s3, %s4
  %s6 = sld [smem:[#allocation0]]
  $region34: #{conv_ff_forward.2} parent=0
    _
  %s8 = ssub.s32 1, %s6
  %s9 = scalar_select 0, %s8, %s6
  // Predicated region
  $region2: #{conv_ff_forward.2} parent=0 // pred_check
    _
  $region3: #{conv_ff_forward.2} parent=0 // pred_check_branch
    %11 = sbr.rel (0) target = $region5
  $region4: #{conv_ff_forward.2} parent=0 // pred_region
    _
  $region5: #{conv_ff_forward.2} parent=0 // pred_fallthru
    _
  // Predicated region
  $region6: #{conv_ff_forward.2} parent=0 // pred_check
    _
  $region7: #{conv_ff_forward.2} parent=0 // pred_check_branch
    %13 = sbr.rel (0) target = $region9
  $region8: #{conv_ff_forward.2} parent=0 // pred_region
    _
  $region9: #{conv_ff_forward.2} parent=0 // pred_fallthru
    _
  %v15 = vld [vmem:[%s0] sm:$0xf]
  %v16 = vld [vmem:[%s0 + $0x4] sm:$0xf]
  %v17 = vld [vmem:[%s0 + $0x8] sm:$0xf]
  %v18 = vld [vmem:[%s0 + $0xc] sm:$0xf]
  %v19 = vld [vmem:[%s0 + $0x10] sm:$0xf]
  %v20 = vld [vmem:[%s0 + $0x14] sm:$0xf]
  %v21 = vld [vmem:[%s0 + $0x18] sm:$0xf]
  %v22 = vld [vmem:[%s0 + $0x1c] sm:$0xf]
  %v23 = vld [vmem:[%s0 + $0x20] sm:$0xf]
  %v24 = vld [vmem:[%s0 + $0x24] sm:$0xf]
  %v25 = vld [vmem:[%s0 + $0x28] sm:$0xf]
  %v26 = vld [vmem:[%s0 + $0x2c] sm:$0xf]
  %v27 = vld [vmem:[%s0 + $0x30] sm:$0xf]
  %v28 = vld [vmem:[%s0 + $0x34] sm:$0xf]
  %v29 = vld [vmem:[%s0 + $0x38] sm:$0xf]
  %v30 = vld [vmem:[%s0 + $0x3c] sm:$0xf]
  %v31 = vld [vmem:[%s1] sm:$0xf]
  %v32 = vld [vmem:[%s1 + $0x4] sm:$0xf]
  %v33 = vld [vmem:[%s1 + $0x8] sm:$0xf]
  %v34 = vld [vmem:[%s1 + $0xc] sm:$0xf]
  %v35 = vld [vmem:[%s1 + $0x10] sm:$0x3]
  %v52 = vunpack.c.l.b16 %v15
  %v53 = vunpack.c.l.b16 %v16
  %v54 = vunpack.c.l.b16 %v17
  %v55 = vunpack.c.l.b16 %v18
  %v56 = vunpack.c.l.b16 %v19
  %v57 = vunpack.c.l.b16 %v20
  %v58 = vunpack.c.l.b16 %v21
  %v59 = vunpack.c.l.b16 %v22
  %v60 = vunpack.c.l.b16 %v23
  %v61 = vunpack.c.l.b16 %v24
  %v62 = vunpack.c.l.b16 %v25
  %v63 = vunpack.c.l.b16 %v26
  %v64 = vunpack.c.l.b16 %v27
  %v65 = vunpack.c.l.b16 %v28
  %v66 = vunpack.c.l.b16 %v29
  %v67 = vunpack.c.l.b16 %v30
  %v68 = vpack.c.b16 %v53, %v52
  %v69 = vpack.c.b16 %v55, %v54
  %v70 = vpack.c.b16 %v57, %v56
  %v71 = vpack.c.b16 %v59, %v58
  %v72 = vpack.c.b16 %v61, %v60
  %v73 = vpack.c.b16 %v63, %v62
  %v74 = vpack.c.b16 %v65, %v64
  %v75 = vpack.c.b16 %v67, %v66
  %v81 = vunpack.c.l.b16 %v31
  %v82 = vunpack.c.l.b16 %v32
  %v83 = vunpack.c.l.b16 %v33
  %v84 = vunpack.c.l.b16 %v34
  %v85 = vunpack.c.l.b16 %v35
  %v86 = vpack.c.b16 %v82, %v81
  %v87 = vpack.c.b16 %v84, %v83
  %v88 = vpack.c.b16 %v85, %v85
  %vm91 = vcmask 293888
  %v93 = vsel %vm91, %v68, 0
  %v96 = vsel %vm91, %v69, 0
  %v99 = vsel %vm91, %v70, 0
  %v102 = vsel %vm91, %v71, 0
  %v105 = vsel %vm91, %v72, 0
  %v108 = vsel %vm91, %v73, 0
  %v111 = vsel %vm91, %v74, 0
  %v114 = vsel %vm91, %v75, 0
  %vm116 = vcmask 1041408
  %v118 = vsel %vm116, %v88, 0
  %120 = vmatpush.bf16.msra.mxu0 0
  %121 = vmatpush.bf16.msra.mxu0 0
  %122 = vmatpush.bf16.msra.mxu0 0
  %123 = vmatpush.bf16.msra.mxu0 0
  %124 = vmatpush.bf16.msra.mxu0 0
  %125 = vmatpush.bf16.msra.mxu0 %v118
  %126 = vmatpush.bf16.msra.mxu0 %v87
  %127 = vmatpush.bf16.msra.mxu0 %v86
  %128 = vmatmul.bf16.gmra.mxu0 %v93
  %v129 = vpop.f32.mrf.mxu0
  %v130 = vadd.f32 0.0, %v129
  %v131 = vpop.f32.mrf.mxu0
  %v132 = vadd.f32 0.0, %v131
  %133 = vmatmul.bf16.gmra.mxu0 %v96
  %v134 = vpop.f32.mrf.mxu0
  %v135 = vadd.f32 0.0, %v134
  %v136 = vpop.f32.mrf.mxu0
  %v137 = vadd.f32 0.0, %v136
  %138 = vmatmul.bf16.gmra.mxu0 %v99
  %v139 = vpop.f32.mrf.mxu0
  %v140 = vadd.f32 0.0, %v139
  %v141 = vpop.f32.mrf.mxu0
  %v142 = vadd.f32 0.0, %v141
  %143 = vmatmul.bf16.gmra.mxu0 %v102
  %v144 = vpop.f32.mrf.mxu0
  %v145 = vadd.f32 0.0, %v144
  %v146 = vpop.f32.mrf.mxu0
  %v147 = vadd.f32 0.0, %v146
  %148 = vmatmul.bf16.gmra.mxu0 %v105
  %v149 = vpop.f32.mrf.mxu0
  %v150 = vadd.f32 0.0, %v149
  %v151 = vpop.f32.mrf.mxu0
  %v152 = vadd.f32 0.0, %v151
  %153 = vmatmul.bf16.gmra.mxu0 %v108
  %v154 = vpop.f32.mrf.mxu0
  %v155 = vadd.f32 0.0, %v154
  %v156 = vpop.f32.mrf.mxu0
  %v157 = vadd.f32 0.0, %v156
  %158 = vmatmul.bf16.gmra.mxu0 %v111
  %v159 = vpop.f32.mrf.mxu0
  %v160 = vadd.f32 0.0, %v159
  %v161 = vpop.f32.mrf.mxu0
  %v162 = vadd.f32 0.0, %v161
  %163 = vmatmul.bf16.gmra.mxu0 %v114
  %v164 = vpop.f32.mrf.mxu0
  %v165 = vadd.f32 0.0, %v164
  %v166 = vpop.f32.mrf.mxu0
  %v167 = vadd.f32 0.0, %v166
  %168 = vdwg.mxu0
  %169 = vst [vmem:[%s2] sm:$0xff] %v130
  %170 = vst [vmem:[%s2 + $0x8] sm:$0xff] %v132
  %171 = vst [vmem:[%s2 + $0x10] sm:$0xff] %v135
  %172 = vst [vmem:[%s2 + $0x18] sm:$0xff] %v137
  %173 = vst [vmem:[%s2 + $0x20] sm:$0xff] %v140
  %174 = vst [vmem:[%s2 + $0x28] sm:$0xff] %v142
  %175 = vst [vmem:[%s2 + $0x30] sm:$0xff] %v145
  %176 = vst [vmem:[%s2 + $0x38] sm:$0xff] %v147
  %177 = vst [vmem:[%s2 + $0x40] sm:$0xff] %v150
  %178 = vst [vmem:[%s2 + $0x48] sm:$0xff] %v152
  %179 = vst [vmem:[%s2 + $0x50] sm:$0xff] %v155
  %180 = vst [vmem:[%s2 + $0x58] sm:$0xff] %v157
  %181 = vst [vmem:[%s2 + $0x60] sm:$0xff] %v160
  %182 = vst [vmem:[%s2 + $0x68] sm:$0xff] %v162
  %183 = vst [vmem:[%s2 + $0x70] sm:$0xff] %v165
  %184 = vst [vmem:[%s2 + $0x78] sm:$0xff] %v167
  %v185 = vadd.f32 %v130, %v132
  %v186 = vadd.f32 %v185, %v135
  %v187 = vadd.f32 %v186, %v137
  %v188 = vadd.f32 %v187, %v140
  %v189 = vadd.f32 %v188, %v142
  %v190 = vadd.f32 %v189, %v145
  %v191 = vadd.f32 %v190, %v147
  %v192 = vadd.f32 %v191, %v150
  %v193 = vadd.f32 %v192, %v152
  %v194 = vadd.f32 %v193, %v155
  %v195 = vadd.f32 %v194, %v157
  %v196 = vadd.f32 %v195, %v160
  %v197 = vadd.f32 %v196, %v162
  %v198 = vadd.f32 %v197, %v165
  %v199 = vadd.f32 %v198, %v167
  %200 = vst [vmem:[%s3] sm:$0xff] %v199
  %v201 = vmul.f32 %v130, %v130
  %v202 = vmul.f32 %v132, %v132
  %v203 = vmul.f32 %v135, %v135
  %v204 = vmul.f32 %v137, %v137
  %v205 = vmul.f32 %v140, %v140
  %v206 = vmul.f32 %v142, %v142
  %v207 = vmul.f32 %v145, %v145
  %v208 = vmul.f32 %v147, %v147
  %v209 = vmul.f32 %v150, %v150
  %v210 = vmul.f32 %v152, %v152
  %v211 = vmul.f32 %v155, %v155
  %v212 = vmul.f32 %v157, %v157
  %v213 = vmul.f32 %v160, %v160
  %v214 = vmul.f32 %v162, %v162
  %v215 = vmul.f32 %v165, %v165
  %v216 = vmul.f32 %v167, %v167
  %v217 = vadd.f32 %v201, %v202
  %v218 = vadd.f32 %v217, %v203
  %v219 = vadd.f32 %v218, %v204
  %v220 = vadd.f32 %v219, %v205
  %v221 = vadd.f32 %v220, %v206
  %v222 = vadd.f32 %v221, %v207
  %v223 = vadd.f32 %v222, %v208
  %v224 = vadd.f32 %v223, %v209
  %v225 = vadd.f32 %v224, %v210
  %v226 = vadd.f32 %v225, %v211
  %v227 = vadd.f32 %v226, %v212
  %v228 = vadd.f32 %v227, %v213
  %v229 = vadd.f32 %v228, %v214
  %v230 = vadd.f32 %v229, %v215
  %v231 = vadd.f32 %v230, %v216
  %232 = vst [vmem:[%s4] sm:$0xff] %v231
  // Predicated region
  $region10: #{conv_ff_forward.2} parent=0 // pred_check
    _
  $region11: #{conv_ff_forward.2} parent=0 // pred_check_branch
    %234 = sbr.rel (0) target = $region13
  $region12: #{conv_ff_forward.2} parent=0 // pred_region
    _
  $region13: #{conv_ff_forward.2} parent=0 // pred_fallthru
    _
  // Predicated region
  $region14: #{conv_ff_forward.2} parent=0 // pred_check
    _
  $region15: #{conv_ff_forward.2} parent=0 // pred_check_branch
    %236 = sbr.rel (0) target = $region17
  $region16: #{conv_ff_forward.2} parent=0 // pred_region
    _
  $region17: #{conv_ff_forward.2} parent=0 // pred_fallthru
    _
  // Predicated region
  $region18: #{conv_ff_forward.2} parent=0 // pred_check
    _
  $region19: #{conv_ff_forward.2} parent=0 // pred_check_branch
    %238 = sbr.rel (0) target = $region21
  $region20: #{conv_ff_forward.2} parent=0 // pred_region
    _
  $region21: #{conv_ff_forward.2} parent=0 // pred_fallthru
    _
  // Predicated region
  $region22: #{conv_ff_forward.2} parent=0 // pred_check
    _
  $region23: #{conv_ff_forward.2} parent=0 // pred_check_branch
    %240 = sbr.rel (0) target = $region25
  $region24: #{conv_ff_forward.2} parent=0 // pred_region
    _
  $region25: #{conv_ff_forward.2} parent=0 // pred_fallthru
    _
  // Predicated region
  $region26: #{conv_ff_forward.2} parent=0 // pred_check
    _
  $region27: #{conv_ff_forward.2} parent=0 // pred_check_branch
    %242 = sbr.rel (0) target = $region29
  $region28: #{conv_ff_forward.2} parent=0 // pred_region
    _
  $region29: #{conv_ff_forward.2} parent=0 // pred_fallthru
    _
  // Predicated region
  $region30: #{conv_ff_forward.2} parent=0 // pred_check
    _
  $region31: #{conv_ff_forward.2} parent=0 // pred_check_branch
    %244 = sbr.rel (0) target = $region33
  $region32: #{conv_ff_forward.2} parent=0 // pred_region
    _
  $region33: #{conv_ff_forward.2} parent=0 // pred_fallthru
    _

</llo_original>
